<compile_context>
chip_gen: v6e
topology: v6e:2x2x1
jax: 0.10.0
libtpu: 0.0.40
codegen_flags: <defaults>
</compile_context>

<pallas_src>
import jax
import jax.numpy as jnp
from jax import lax
from jax.experimental import pallas as pl
from jax.experimental.pallas import tpu as pltpu

LN_EPS = 1e-5


def _mln_kernel(x_ref, c_ref, wr_ref, br_ref, wgb_ref, bgb_ref, o_ref):
    f_dim = x_ref.shape[-1]

    # --- LayerNorm(x) over the feature (last) axis, no affine; f32 stats ---
    x = x_ref[...].astype(jnp.float32)
    mean = jnp.mean(x, axis=-1, keepdims=True)
    xc = x - mean
    var = jnp.mean(xc * xc, axis=-1, keepdims=True)   # biased variance (PyTorch LN)
    x_ln = xc * lax.rsqrt(var + LN_EPS)

    # --- reduce: Linear(c_dim -> f_dim) + ReLU (MXU, f32 accumulate) ---
    h = jnp.dot(c_ref[...], wr_ref[...], preferred_element_type=jnp.float32)
    h = jnp.maximum(h + br_ref[...], 0.0)

    # --- fused gamma|beta projection: one [f_dim, 2*f_dim] matmul + one bias add ---
    gb = jnp.dot(h.astype(wgb_ref.dtype), wgb_ref[...],
                 preferred_element_type=jnp.float32) + bgb_ref[...]
    gamma = gb[:, :f_dim]
    beta = gb[:, f_dim:]

    # --- modulate (f32 VPU epilogue) ---
    o_ref[...] = (gamma * x_ln + beta).astype(o_ref.dtype)


def mln_forward(x, c, params, *, tile_m=512, matmul_dtype=None):
    """x: [N, f_dim], c: [N, c_dim]. Returns [N, f_dim].

    tile_m: row tile (multiple of 8; 256/512 recommended). Clamped for small N,
            ragged N is zero-padded and sliced back.
    matmul_dtype: optional dtype (e.g. jnp.bfloat16) for the MXU operands only;
            LayerNorm and the modulate epilogue stay in f32.
    """
    N, f_dim = x.shape
    _, c_dim = c.shape
    out_dtype = x.dtype

    wr, br = params["wr"], params["br"]
    # Pack gamma/beta weights once into a single [f_dim, 2*f_dim] matmul.
    wgb = jnp.concatenate([params["wg"], params["wb"]], axis=1)
    bgb = jnp.concatenate([params["bg"], params["bb"]], axis=1)
    br = br.astype(jnp.float32)
    bgb = bgb.astype(jnp.float32)

    if matmul_dtype is not None:
        c = c.astype(matmul_dtype)
        wr = wr.astype(matmul_dtype)
        wgb = wgb.astype(matmul_dtype)

    # Large row tile (fills MXU M axis / amortizes grid overhead), clamped for
    # small problems; always a multiple of 8 sublanes.
    tile_m = max(8, min(tile_m, pl.cdiv(N, 8) * 8))
    pad = (-N) % tile_m
    if pad:
        x = jnp.pad(x, ((0, pad), (0, 0)))
        c = jnp.pad(c, ((0, pad), (0, 0)))
    n_rows = N + pad
    grid = (n_rows // tile_m,)

    row_x = pl.BlockSpec((tile_m, f_dim), lambda i: (i, 0))
    row_c = pl.BlockSpec((tile_m, c_dim), lambda i: (i, 0))
    full = lambda shape: pl.BlockSpec(shape, lambda i: (0, 0))

    out = pl.pallas_call(
        _mln_kernel,
        out_shape=jax.ShapeDtypeStruct((n_rows, f_dim), out_dtype),
        grid_spec=pltpu.PrefetchScalarGridSpec(
            num_scalar_prefetch=0,
            grid=grid,
            in_specs=[
                row_x,                       # x tile
                row_c,                       # c tile
                full((c_dim, f_dim)),        # Wr (pre-transposed)
                full((1, f_dim)),            # br
                full((f_dim, 2 * f_dim)),    # Wg | Wb packed
                full((1, 2 * f_dim)),        # bg | bb packed
            ],
            out_specs=row_x,
        ),
        compiler_params=pltpu.CompilerParams(dimension_semantics=("parallel",)),
    )(x, c, wr, br, wgb, bgb)

    return out[:N] if pad else out


def init_mln_params(key, c_dim, f_dim, dtype=jnp.float32):
    """Deterministic init matching MLN.__init__ / init_weight().

    reduce Linear: PyTorch-style uniform init (synthetic, deterministic).
    gamma Linear:  weight = 0, bias = 1.
    beta  Linear:  weight = 0, bias = 0.
    Weights stored as [in_features, out_features] (already transposed).
    """
    k_w, k_b = jax.random.split(key)
    bound = 1.0 / jnp.sqrt(jnp.float32(c_dim))
    wr = jax.random.uniform(k_w, (c_dim, f_dim), dtype, -bound, bound)
    br = jax.random.uniform(k_b, (1, f_dim), dtype, -bound, bound)
    return {
        "wr": wr,
        "br": br,
        "wg": jnp.zeros((f_dim, f_dim), dtype),
        "bg": jnp.ones((1, f_dim), dtype),
        "wb": jnp.zeros((f_dim, f_dim), dtype),
        "bb": jnp.zeros((1, f_dim), dtype),
    }


def mln_reference(x, c, params):
    """Pure-JAX reference (mirrors the PyTorch forward)."""
    mean = jnp.mean(x, axis=-1, keepdims=True)
    var = jnp.mean((x - mean) ** 2, axis=-1, keepdims=True)
    x_ln = (x - mean) / jnp.sqrt(var + LN_EPS)
    h = jnp.maximum(c @ params["wr"] + params["br"], 0.0)
    gamma = h @ params["wg"] + params["bg"]
    beta = h @ params["wb"] + params["bb"]
    return gamma * x_ln + beta


if __name__ == "__main__":
    # Small shapes implied by the module: batch=2, seq=8 -> N=16 rows,
    # c_dim=32 (latent code), f_dim=128 (feature dim).
    batch, seq = 2, 8
    c_dim, f_dim = 32, 128
    N = batch * seq

    key = jax.random.PRNGKey(0)
    kx, kc, kp, kw = jax.random.split(key, 4)
    x = jax.random.normal(kx, (batch, seq, f_dim), jnp.float32)
    c = jax.random.normal(kc, (batch, seq, c_dim), jnp.float32)

    # Glue: flatten leading dims outside the kernel.
    x2 = x.reshape(N, f_dim)
    c2 = c.reshape(N, c_dim)

    # 1) PyTorch-init params (gamma W=0,b=1 / beta W=0,b=0): tight tolerance.
    params = init_mln_params(kp, c_dim, f_dim)
    out = jax.block_until_ready(mln_forward(x2, c2, params))
    ref = mln_reference(x2, c2, params)
    assert jnp.allclose(out, ref, atol=1e-5, rtol=1e-5), "mismatch (init params)"

    # 2) Random params: exercises the fused gamma|beta matmul path.
    kws = jax.random.split(kw, 6)
    rparams = {
        "wr": jax.random.normal(kws[0], (c_dim, f_dim), jnp.float32) * 0.1,
        "br": jax.random.normal(kws[1], (1, f_dim), jnp.float32) * 0.1,
        "wg": jax.random.normal(kws[2], (f_dim, f_dim), jnp.float32) * 0.1,
        "bg": jax.random.normal(kws[3], (1, f_dim), jnp.float32) * 0.1,
        "wb": jax.random.normal(kws[4], (f_dim, f_dim), jnp.float32) * 0.1,
        "bb": jax.random.normal(kws[5], (1, f_dim), jnp.float32) * 0.1,
    }
    out_r = jax.block_until_ready(mln_forward(x2, c2, rparams))
    ref_r = mln_reference(x2, c2, rparams)
    assert jnp.allclose(out_r, ref_r, atol=1e-4, rtol=1e-4), "mismatch (random params)"

    # 3) bf16 MXU-operand fast path (v6e/v7x); LN / epilogue stay f32.
    out_bf = jax.block_until_ready(
        mln_forward(x2, c2, rparams, matmul_dtype=jnp.bfloat16))
    assert jnp.allclose(out_bf, ref_r, atol=5e-2, rtol=5e-2), "mismatch (bf16 matmul)"

    print("KERNEL_OK")
</pallas_src>

<mosaic_0001>
module attributes {stable_mosaic.version = 11 : i64} {
  func.func @_mln_kernel(%arg0: i32, %arg1: memref<16x128xf32, #tpu.memory_space<vmem>>, %arg2: memref<16x32xf32, #tpu.memory_space<vmem>>, %arg3: memref<32x128xf32, #tpu.memory_space<vmem>>, %arg4: memref<1x128xf32, #tpu.memory_space<vmem>>, %arg5: memref<128x256xf32, #tpu.memory_space<vmem>>, %arg6: memref<1x256xf32, #tpu.memory_space<vmem>>, %arg7: memref<16x128xf32, #tpu.memory_space<vmem>>) attributes {dimension_semantics = [#tpu.dimension_semantics<parallel>], iteration_bounds = array<i64: 1>, scalar_prefetch = 0 : i64, scratch_operands = 0 : i64, tpu.core_type = #tpu.core_type<tc>, window_params = [{transform_indices = @transform_0, window_bounds = array<i64: 16, 128>}, {transform_indices = @transform_1, window_bounds = array<i64: 16, 32>}, {pipeline_mode = #tpu.pipeline_mode<synchronous>, transform_indices = @transform_2, window_bounds = array<i64: 32, 128>}, {pipeline_mode = #tpu.pipeline_mode<synchronous>, transform_indices = @transform_3, window_bounds = array<i64: 1, 128>}, {pipeline_mode = #tpu.pipeline_mode<synchronous>, transform_indices = @transform_4, window_bounds = array<i64: 128, 256>}, {pipeline_mode = #tpu.pipeline_mode<synchronous>, transform_indices = @transform_5, window_bounds = array<i64: 1, 256>}, {transform_indices = @transform_6, window_bounds = array<i64: 16, 128>}]} {
    %c0 = arith.constant 0 : index
    %c0_0 = arith.constant 0 : index
    %0 = vector.load %arg1[%c0, %c0_0] : memref<16x128xf32, #tpu.memory_space<vmem>>, vector<16x128xf32>
    %cst = arith.constant dense<0.000000e+00> : vector<16xf32>
    %1 = vector.multi_reduction <add>, %0, %cst [1] : vector<16x128xf32> to vector<16xf32>
    %2 = vector.shape_cast %1 : vector<16xf32> to vector<16x1xf32>
    %cst_1 = arith.constant 1.280000e+02 : f32
    %3 = vector.broadcast %cst_1 : f32 to vector<16x1xf32>
    %4 = arith.divf %2, %3 : vector<16x1xf32>
    %5 = vector.broadcast %4 : vector<16x1xf32> to vector<16x128xf32>
    %6 = arith.subf %0, %5 : vector<16x128xf32>
    %7 = arith.mulf %6, %6 : vector<16x128xf32>
    %cst_2 = arith.constant dense<0.000000e+00> : vector<16xf32>
    %8 = vector.multi_reduction <add>, %7, %cst_2 [1] : vector<16x128xf32> to vector<16xf32>
    %9 = vector.shape_cast %8 : vector<16xf32> to vector<16x1xf32>
    %cst_3 = arith.constant 1.280000e+02 : f32
    %10 = vector.broadcast %cst_3 : f32 to vector<16x1xf32>
    %11 = arith.divf %9, %10 : vector<16x1xf32>
    %cst_4 = arith.constant 9.99999974E-6 : f32
    %12 = vector.broadcast %cst_4 : f32 to vector<16x1xf32>
    %13 = arith.addf %11, %12 : vector<16x1xf32>
    %14 = math.rsqrt %13 : vector<16x1xf32>
    %15 = vector.broadcast %14 : vector<16x1xf32> to vector<16x128xf32>
    %16 = arith.mulf %6, %15 : vector<16x128xf32>
    %c0_5 = arith.constant 0 : index
    %c0_6 = arith.constant 0 : index
    %17 = vector.load %arg2[%c0_5, %c0_6] : memref<16x32xf32, #tpu.memory_space<vmem>>, vector<16x32xf32>
    %c0_7 = arith.constant 0 : index
    %c0_8 = arith.constant 0 : index
    %18 = vector.load %arg3[%c0_7, %c0_8] : memref<32x128xf32, #tpu.memory_space<vmem>>, vector<32x128xf32>
    %cst_9 = arith.constant dense<0.000000e+00> : vector<16x128xf32>
    %19 = tpu.matmul %17, %18, %cst_9 {dimension_numbers = #tpu.dot_dimension_numbers<[1], [0], [0], [1], [0, 0, 1, 1], [], []>} : vector<16x32xf32>, vector<32x128xf32>, vector<16x128xf32> -> vector<16x128xf32>
    %c0_10 = arith.constant 0 : index
    %c0_11 = arith.constant 0 : index
    %20 = vector.load %arg4[%c0_10, %c0_11] : memref<1x128xf32, #tpu.memory_space<vmem>>, vector<1x128xf32>
    %21 = vector.broadcast %20 : vector<1x128xf32> to vector<16x128xf32>
    %22 = arith.addf %19, %21 : vector<16x128xf32>
    %cst_12 = arith.constant 0.000000e+00 : f32
    %23 = vector.broadcast %cst_12 : f32 to vector<16x128xf32>
    %24 = arith.maximumf %22, %23 : vector<16x128xf32>
    %c0_13 = arith.constant 0 : index
    %c0_14 = arith.constant 0 : index
    %25 = vector.load %arg5[%c0_13, %c0_14] : memref<128x256xf32, #tpu.memory_space<vmem>>, vector<128x256xf32>
    %cst_15 = arith.constant dense<0.000000e+00> : vector<16x256xf32>
    %26 = tpu.matmul %24, %25, %cst_15 {dimension_numbers = #tpu.dot_dimension_numbers<[1], [0], [0], [1], [0, 0, 1, 1], [], []>} : vector<16x128xf32>, vector<128x256xf32>, vector<16x256xf32> -> vector<16x256xf32>
    %c0_16 = arith.constant 0 : index
    %c0_17 = arith.constant 0 : index
    %27 = vector.load %arg6[%c0_16, %c0_17] : memref<1x256xf32, #tpu.memory_space<vmem>>, vector<1x256xf32>
    %28 = vector.broadcast %27 : vector<1x256xf32> to vector<16x256xf32>
    %29 = arith.addf %26, %28 : vector<16x256xf32>
    %30 = vector.extract_strided_slice %29 {offsets = [0, 0], sizes = [16, 128], strides = [1, 1]} : vector<16x256xf32> to vector<16x128xf32>
    %31 = vector.extract_strided_slice %29 {offsets = [0, 128], sizes = [16, 128], strides = [1, 1]} : vector<16x256xf32> to vector<16x128xf32>
    %32 = arith.mulf %30, %16 : vector<16x128xf32>
    %33 = arith.addf %32, %31 : vector<16x128xf32>
    %c0_18 = arith.constant 0 : index
    %c0_19 = arith.constant 0 : index
    %34 = vector.load %arg7[%c0_18, %c0_19] : memref<16x128xf32, #tpu.memory_space<vmem>>, vector<16x128xf32>
    tpu.vector_store %arg7[%c0_18, %c0_19], %33 {strides = array<i32>} : memref<16x128xf32, #tpu.memory_space<vmem>>, vector<16x128xf32>,
    return
  }
  func.func @transform_0(%arg0: i32) -> (i32, i32) {
    %c0_i32 = arith.constant 0 : i32
    %c0_i32_0 = arith.constant 0 : i32
    return %arg0, %c0_i32 : i32, i32
  }
  func.func @transform_1(%arg0: i32) -> (i32, i32) {
    %c0_i32 = arith.constant 0 : i32
    %c0_i32_0 = arith.constant 0 : i32
    return %arg0, %c0_i32 : i32, i32
  }
  func.func @transform_2(%arg0: i32) -> (i32, i32) {
    %c0_i32 = arith.constant 0 : i32
    %c0_i32_0 = arith.constant 0 : i32
    %c0_i32_1 = arith.constant 0 : i32
    return %c0_i32, %c0_i32_0 : i32, i32
  }
  func.func @transform_3(%arg0: i32) -> (i32, i32) {
    %c0_i32 = arith.constant 0 : i32
    %c0_i32_0 = arith.constant 0 : i32
    %c0_i32_1 = arith.constant 0 : i32
    return %c0_i32, %c0_i32_0 : i32, i32
  }
  func.func @transform_4(%arg0: i32) -> (i32, i32) {
    %c0_i32 = arith.constant 0 : i32
    %c0_i32_0 = arith.constant 0 : i32
    %c0_i32_1 = arith.constant 0 : i32
    return %c0_i32, %c0_i32_0 : i32, i32
  }
  func.func @transform_5(%arg0: i32) -> (i32, i32) {
    %c0_i32 = arith.constant 0 : i32
    %c0_i32_0 = arith.constant 0 : i32
    %c0_i32_1 = arith.constant 0 : i32
    return %c0_i32, %c0_i32_0 : i32, i32
  }
  func.func @transform_6(%arg0: i32) -> (i32, i32) {
    %c0_i32 = arith.constant 0 : i32
    %c0_i32_0 = arith.constant 0 : i32
    return %arg0, %c0_i32 : i32, i32
  }
}

</mosaic_0001>

<llo_original>
// kernel: tpu_custom_call.1
$region0: #{tpu_custom_call.1}
  #allocation0 [shape = 'u32[]', space=smem, size = 0x4, offset = 0x4, fixed_abs, tag = 'smem constant byte address 0x4 - core index']
  #allocation1 [shape = 'u32[144,128]{1,0:T(1,128)}', space=vmem, size = 0x12000, scoped, tag = 'internal scratch']
  %s0 = inlined_call_operand.hbm [shape: f32[16,128], index: 0, kind: input, shape index: {}]
  %s1 = inlined_call_operand.hbm [shape: f32[16,32], index: 1, kind: input, shape index: {}]
  %s2 = inlined_call_operand.hbm [shape: f32[32,128], index: 2, kind: input, shape index: {}]
  %s3 = inlined_call_operand.vmem [shape: f32[1,128], index: 3, kind: input, shape index: {}]
  %s4 = inlined_call_operand.hbm [shape: f32[128,256], index: 4, kind: input, shape index: {}]
  %s5 = inlined_call_operand.vmem [shape: f32[1,256], index: 5, kind: input, shape index: {}]
  %s6 = inlined_call_operand.hbm [shape: f32[16,128], index: 6, kind: output, shape index: {}]
  %s7 = sld [smem:[#allocation0]]
  $region50: #{tpu_custom_call.1} parent=0
    _
  %s9 = ssub.s32 1, %s7
  %s10 = scalar_select 0, %s9, %s7
  $region1: #{tpu_custom_call.1} parent=0
    #allocation2 [shape = 'u8[8192]{0}', space=vmem, size = 0x2000, scoped, tag = 'input window, operand 0, single buffered']
    #allocation3 [shape = 's32[1]{0}', space=sflag, size = 0x4, scoped, tag = 'scoped memory for tpu_custom_call.1']
    #allocation4 [shape = 's32[1]{0}', space=sflag, size = 0x4, scoped, tag = 'scoped memory for tpu_custom_call.1']
    #allocation5 [shape = 'u8[8192]{0}', space=vmem, size = 0x2000, scoped, tag = 'input window, operand 1, single buffered']
    #allocation6 [shape = 's32[1]{0}', space=sflag, size = 0x4, scoped, tag = 'scoped memory for tpu_custom_call.1']
    #allocation7 [shape = 'u8[16384]{0}', space=vmem, size = 0x4000, scoped, tag = 'input window, operand 2, single buffered']
    #allocation8 [shape = 'u8[131072]{0}', space=vmem, size = 0x20000, scoped, tag = 'input window, operand 4, single buffered']
    #allocation9 [shape = 's32[1]{0}', space=sflag, size = 0x4, scoped, tag = 'scoped memory for tpu_custom_call.1']
    #allocation10 [shape = 'u8[8192]{0}', space=vmem, size = 0x2000, scoped, tag = 'output window, operand 0, single buffered']
    %11 = vsyncpa [#allocation3], 0
    %12 = vsyncpa [#allocation6], 0
    %13 = vsyncpa [#allocation9], 0
    %14 = vsyncpa [#allocation4], 0
    // Predicated region
    $region2: #{tpu_custom_call.1} parent=1 // pred_check
      _
    $region3: #{tpu_custom_call.1} parent=1 // pred_check_branch
      %16 = sbr.rel (0) target = $region5
    $region4: #{tpu_custom_call.1} parent=1 // pred_region
      %s18 = ssub.s32 256, 256
      %19 = vsyncadd [#allocation3], %s18
      %s20 = sshll.u32 [#allocation2], 4
      %s21 = int_to_ptr.vmem [resolvable:$true] %s20
      %26 = dma.hbm_to_vmem [thread:$0]  %s0, 256, %s21, [#allocation3], 128, 128, 8
    $region5: #{tpu_custom_call.1} parent=1 // pred_fallthru
      _
    // Predicated region
    $region6: #{tpu_custom_call.1} parent=1 // pred_check
      _
    $region7: #{tpu_custom_call.1} parent=1 // pred_check_branch
      %28 = sbr.rel (0) target = $region9
    $region8: #{tpu_custom_call.1} parent=1 // pred_region
      %s30 = ssub.s32 256, 256
      %31 = vsyncadd [#allocation6], %s30
      %s32 = sshll.u32 [#allocation5], 4
      %s33 = int_to_ptr.vmem [resolvable:$true] %s32
      %38 = dma.hbm_to_vmem [thread:$0]  %s1, 256, %s33, [#allocation6], 128, 128, 8
    $region9: #{tpu_custom_call.1} parent=1 // pred_fallthru
      _
    // Predicated region
    $region10: #{tpu_custom_call.1} parent=1 // pred_check
      _
    $region11: #{tpu_custom_call.1} parent=1 // pred_check_branch
      %40 = sbr.rel (0) target = $region13
    $region12: #{tpu_custom_call.1} parent=1 // pred_region
      %s42 = ssub.s32 512, 512
      %43 = vsyncadd [#allocation6], %s42
      %s44 = sshll.u32 [#allocation7], 4
      %s45 = int_to_ptr.vmem [resolvable:$true] %s44
      %50 = dma.hbm_to_vmem [thread:$0]  %s2, 512, %s45, [#allocation6], 128, 128, 8
    $region13: #{tpu_custom_call.1} parent=1 // pred_fallthru
      _
    // Predicated region
    $region14: #{tpu_custom_call.1} parent=1 // pred_check
      _
    $region15: #{tpu_custom_call.1} parent=1 // pred_check_branch
      %52 = sbr.rel (0) target = $region17
    $region16: #{tpu_custom_call.1} parent=1 // pred_region
      _
    $region17: #{tpu_custom_call.1} parent=1 // pred_fallthru
      _
    // Predicated region
    $region18: #{tpu_custom_call.1} parent=1 // pred_check
      _
    $region19: #{tpu_custom_call.1} parent=1 // pred_check_branch
      %54 = sbr.rel (0) target = $region21
    $region20: #{tpu_custom_call.1} parent=1 // pred_region
      %s56 = ssub.s32 4096, 4096
      %57 = vsyncadd [#allocation9], %s56
      %s58 = sshll.u32 [#allocation8], 4
      %s59 = int_to_ptr.vmem [resolvable:$true] %s58
      %64 = dma.hbm_to_vmem [thread:$0]  %s4, 4096, %s59, [#allocation9], 256, 256, 16
    $region21: #{tpu_custom_call.1} parent=1 // pred_fallthru
      _
    // Predicated region
    $region22: #{tpu_custom_call.1} parent=1 // pred_check
      _
    $region23: #{tpu_custom_call.1} parent=1 // pred_check_branch
      %66 = sbr.rel (0) target = $region25
    $region24: #{tpu_custom_call.1} parent=1 // pred_region
      _
    $region25: #{tpu_custom_call.1} parent=1 // pred_fallthru
      _
    // Predicated region
    $region26: #{tpu_custom_call.1} parent=1 // pred_check
      _
    $region27: #{tpu_custom_call.1} parent=1 // pred_check_branch
      %68 = sbr.rel (0) target = $region29
    $region28: #{tpu_custom_call.1} parent=1 // pred_region
      %69 = dma.done [#allocation3], 256
    $region29: #{tpu_custom_call.1} parent=1 // pred_fallthru
      _
    // Predicated region
    $region30: #{tpu_custom_call.1} parent=1 // pred_check
      _
    $region31: #{tpu_custom_call.1} parent=1 // pred_check_branch
      %71 = sbr.rel (0) target = $region33
    $region32: #{tpu_custom_call.1} parent=1 // pred_region
      %72 = dma.done [#allocation6], 256
    $region33: #{tpu_custom_call.1} parent=1 // pred_fallthru
      _
    // Predicated region
    $region34: #{tpu_custom_call.1} parent=1 // pred_check
      _
    $region35: #{tpu_custom_call.1} parent=1 // pred_check_branch
      %74 = sbr.rel (0) target = $region37
    $region36: #{tpu_custom_call.1} parent=1 // pred_region
      %75 = dma.done [#allocation6], 512
    $region37: #{tpu_custom_call.1} parent=1 // pred_fallthru
      _
    // Predicated region
    $region38: #{tpu_custom_call.1} parent=1 // pred_check
      _
    $region39: #{tpu_custom_call.1} parent=1 // pred_check_branch
      %77 = sbr.rel (0) target = $region41
    $region40: #{tpu_custom_call.1} parent=1 // pred_region
      %78 = dma.done [#allocation9], 4096
    $region41: #{tpu_custom_call.1} parent=1 // pred_fallthru
      _
    %v79 = vld [vmem:[#allocation2] sm:$0xff]
    %v80 = vld [vmem:[#allocation2 + $0x8] sm:$0xff]
    %81 = vadd.xlane.f32.xlu0 %v79
    %v82 = vpop.xlane.xlu0 %81
    %83 = vadd.xlane.f32.xlu0 %v80
    %v84 = vpop.xlane.xlu0 %83
    %v85 = vrcp.pop 128.0
    %v86 = vmul.f32 %v82, %v85
    %v87 = vmul.f32 %v84, %v85
    %v88 = vsub.f32 %v79, %v86
    %v89 = vsub.f32 %v80, %v87
    %v90 = vmul.f32 %v88, %v88
    %v91 = vmul.f32 %v89, %v89
    %92 = vadd.xlane.f32.xlu0 %v90
    %v93 = vpop.xlane.xlu0 %92
    %94 = vadd.xlane.f32.xlu0 %v91
    %v95 = vpop.xlane.xlu0 %94
    %v96 = vmul.f32 %v93, %v85
    %v97 = vmul.f32 %v95, %v85
    %v98 = vadd.f32 %v96, 1e-05
    %v99 = vadd.f32 %v97, 1e-05
    %v100 = vrsqrt.pop %v98
    %v101 = vrsqrt.pop %v99
    %v102 = vmul.f32 %v88, %v100
    %v103 = vmul.f32 %v89, %v101
    %v104 = vld [vmem:[#allocation5] sm:$0xff]
    %v105 = vld [vmem:[#allocation5 + $0x8] sm:$0xff]
    %v106 = vld [vmem:[#allocation7] sm:$0xff]
    %v107 = vld [vmem:[#allocation7 + $0x8] sm:$0xff]
    %v108 = vld [vmem:[#allocation7 + $0x10] sm:$0xff]
    %v109 = vld [vmem:[#allocation7 + $0x18] sm:$0xff]
    %v110 = vld [vmem:[%s3] sm:$0x1]
    %v112 = vlaneseq
    %v113 = vshrl.u32 %v112, 7
    %v114 = vsub.s32 0, %v113
    %v115 = vrot.slane %v110, %v114
    %vm117 = vcmask 261120
    %v119 = vsel %vm117, %v104, 0
    %v122 = vsel %vm117, %v105, 0
    %124 = vmatprep.subr.mxu0 0.0
    %125 = vmatpush1.msra.mxu0 0.0
    %126 = vmatprep.subr.mxu0 0.0
    %127 = vmatpush1.msra.mxu0 0.0
    %128 = vmatprep.subr.mxu0 0.0
    %129 = vmatpush1.msra.mxu0 0.0
    %130 = vmatprep.subr.mxu0 0.0
    %131 = vmatpush1.msra.mxu0 0.0
    %132 = vmatprep.subr.mxu0 0.0
    %133 = vmatpush1.msra.mxu0 0.0
    %134 = vmatprep.subr.mxu0 0.0
    %135 = vmatpush1.msra.mxu0 0.0
    %136 = vmatprep.subr.mxu0 0.0
    %137 = vmatpush1.msra.mxu0 0.0
    %138 = vmatprep.subr.mxu0 0.0
    %139 = vmatpush1.msra.mxu0 0.0
    %140 = vmatprep.subr.mxu0 0.0
    %141 = vmatpush1.msra.mxu0 0.0
    %142 = vmatprep.subr.mxu0 0.0
    %143 = vmatpush1.msra.mxu0 0.0
    %144 = vmatprep.subr.mxu0 0.0
    %145 = vmatpush1.msra.mxu0 0.0
    %146 = vmatprep.subr.mxu0 0.0
    %147 = vmatpush1.msra.mxu0 0.0
    %148 = vmatprep.subr.mxu0 0.0
    %149 = vmatpush1.msra.mxu0 %v109
    %150 = vmatprep.subr.mxu0 0.0
    %151 = vmatpush1.msra.mxu0 %v108
    %152 = vmatprep.subr.mxu0 0.0
    %153 = vmatpush1.msra.mxu0 %v107
    %154 = vmatprep.subr.mxu0 0.0
    %155 = vmatpush1.msra.mxu0 %v106
    %156 = vmatprep.subr.mxu0 0.0
    %157 = vmatpush2.msra.mxu0 0.0
    %158 = vmatprep.subr.mxu0 0.0
    %159 = vmatpush2.msra.mxu0 0.0
    %160 = vmatprep.subr.mxu0 0.0
    %161 = vmatpush2.msra.mxu0 0.0
    %162 = vmatprep.subr.mxu0 0.0
    %163 = vmatpush2.msra.mxu0 0.0
    %164 = vmatprep.subr.mxu0 0.0
    %165 = vmatpush2.msra.mxu0 0.0
    %166 = vmatprep.subr.mxu0 0.0
    %167 = vmatpush2.msra.mxu0 0.0
    %168 = vmatprep.subr.mxu0 0.0
    %169 = vmatpush2.msra.mxu0 0.0
    %170 = vmatprep.subr.mxu0 0.0
    %171 = vmatpush2.msra.mxu0 0.0
    %172 = vmatprep.subr.mxu0 0.0
    %173 = vmatpush2.msra.mxu0 0.0
    %174 = vmatprep.subr.mxu0 0.0
    %175 = vmatpush2.msra.mxu0 0.0
    %176 = vmatprep.subr.mxu0 0.0
    %177 = vmatpush2.msra.mxu0 0.0
    %178 = vmatprep.subr.mxu0 0.0
    %179 = vmatpush2.msra.mxu0 0.0
    %180 = vmatprep.subr.mxu0 0.0
    %181 = vmatpush2.msra.mxu0 0.0
    %182 = vmatprep.subr.mxu0 0.0
    %183 = vmatpush2.msra.mxu0 0.0
    %184 = vmatprep.subr.mxu0 0.0
    %185 = vmatpush2.msra.mxu0 0.0
    %186 = vmatprep.subr.mxu0 0.0
    %187 = vmatpush2.msra.mxu0 0.0
    %188 = vmatprep.mubr.f32.mxu0 0.0
    %189 = vmatmul.mubr.f32.gmra.mxu0 %v119
    %v190 = vpop.f32.mrf.mxu0
    %v191 = vadd.f32 %v115, %v190
    %v192 = vpop.f32.mrf.mxu0
    %193 = vmatprep.mubr.f32.mxu0 0.0
    %194 = vmatmul.mubr.f32.gmra.mxu0 %v122
    %v195 = vpop.f32.mrf.mxu0
    %v196 = vadd.f32 %v115, %v195
    %v197 = vpop.f32.mrf.mxu0
    %198 = vdwg.mxu0
    %v199 = vmax.f32 %v191, 0.0
    %v200 = vmax.f32 %v196, 0.0
    %v201 = vld [vmem:[#allocation8] sm:$0xff]
    %v202 = vld [vmem:[#allocation8 + $0x8] sm:$0xff]
    %v203 = vld [vmem:[#allocation8 + $0x10] sm:$0xff]
    %v204 = vld [vmem:[#allocation8 + $0x18] sm:$0xff]
    %v205 = vld [vmem:[#allocation8 + $0x20] sm:$0xff]
    %v206 = vld [vmem:[#allocation8 + $0x28] sm:$0xff]
    %v207 = vld [vmem:[#allocation8 + $0x30] sm:$0xff]
    %v208 = vld [vmem:[#allocation8 + $0x38] sm:$0xff]
    %v209 = vld [vmem:[#allocation8 + $0x40] sm:$0xff]
    %v210 = vld [vmem:[#allocation8 + $0x48] sm:$0xff]
    %v211 = vld [vmem:[#allocation8 + $0x50] sm:$0xff]
    %v212 = vld [vmem:[#allocation8 + $0x58] sm:$0xff]
    %v213 = vld [vmem:[#allocation8 + $0x60] sm:$0xff]
    %v214 = vld [vmem:[#allocation8 + $0x68] sm:$0xff]
    %v215 = vld [vmem:[#allocation8 + $0x70] sm:$0xff]
    %v216 = vld [vmem:[#allocation8 + $0x78] sm:$0xff]
    %v217 = vld [vmem:[#allocation8 + $0x80] sm:$0xff]
    %v218 = vld [vmem:[#allocation8 + $0x88] sm:$0xff]
    %v219 = vld [vmem:[#allocation8 + $0x90] sm:$0xff]
    %v220 = vld [vmem:[#allocation8 + $0x98] sm:$0xff]
    %v221 = vld [vmem:[#allocation8 + $0xa0] sm:$0xff]
    %v222 = vld [vmem:[#allocation8 + $0xa8] sm:$0xff]
    %v223 = vld [vmem:[#allocation8 + $0xb0] sm:$0xff]
    %v224 = vld [vmem:[#allocation8 + $0xb8] sm:$0xff]
    %v225 = vld [vmem:[#allocation8 + $0xc0] sm:$0xff]
    %v226 = vld [vmem:[#allocation8 + $0xc8] sm:$0xff]
    %v227 = vld [vmem:[#allocation8 + $0xd0] sm:$0xff]
    %v228 = vld [vmem:[#allocation8 + $0xd8] sm:$0xff]
    %v229 = vld [vmem:[#allocation8 + $0xe0] sm:$0xff]
    %v230 = vld [vmem:[#allocation8 + $0xe8] sm:$0xff]
    %v231 = vld [vmem:[#allocation8 + $0xf0] sm:$0xff]
    %v232 = vld [vmem:[#allocation8 + $0xf8] sm:$0xff]
    %v233 = vld [vmem:[%s5] sm:$0x3]
    %v235 = vlaneseq
    %v236 = vshrl.u32 %v235, 7
    %v237 = vsub.s32 0, %v236
    %v238 = vrot.slane %v233, %v237
    %v239 = vlaneseq
    %v240 = vshrl.u32 %v239, 7
    %v241 = vsub.s32 1, %v240
    %v242 = vrot.slane %v233, %v241
    %245 = vmatprep.subr.mxu0 %v232
    %246 = vmatpush1.msra.mxu0 %v231
    %247 = vmatprep.subr.mxu0 %v230
    %248 = vmatpush1.msra.mxu0 %v229
    %249 = vmatprep.subr.mxu0 %v228
    %250 = vmatpush1.msra.mxu0 %v227
    %251 = vmatprep.subr.mxu0 %v226
    %252 = vmatpush1.msra.mxu0 %v225
    %253 = vmatprep.subr.mxu0 %v224
    %254 = vmatpush1.msra.mxu0 %v223
    %255 = vmatprep.subr.mxu0 %v222
    %256 = vmatpush1.msra.mxu0 %v221
    %257 = vmatprep.subr.mxu0 %v220
    %258 = vmatpush1.msra.mxu0 %v219
    %259 = vmatprep.subr.mxu0 %v218
    %260 = vmatpush1.msra.mxu0 %v217
    %261 = vmatprep.subr.mxu0 %v216
    %262 = vmatpush1.msra.mxu0 %v215
    %263 = vmatprep.subr.mxu0 %v214
    %264 = vmatpush1.msra.mxu0 %v213
    %265 = vmatprep.subr.mxu0 %v212
    %266 = vmatpush1.msra.mxu0 %v211
    %267 = vmatprep.subr.mxu0 %v210
    %268 = vmatpush1.msra.mxu0 %v209
    %269 = vmatprep.subr.mxu0 %v208
    %270 = vmatpush1.msra.mxu0 %v207
    %271 = vmatprep.subr.mxu0 %v206
    %272 = vmatpush1.msra.mxu0 %v205
    %273 = vmatprep.subr.mxu0 %v204
    %274 = vmatpush1.msra.mxu0 %v203
    %275 = vmatprep.subr.mxu0 %v202
    %276 = vmatpush1.msra.mxu0 %v201
    %277 = vmatprep.subr.mxu0 0.0
    %278 = vmatpush2.msra.mxu0 0.0
    %279 = vmatprep.subr.mxu0 0.0
    %280 = vmatpush2.msra.mxu0 0.0
    %281 = vmatprep.subr.mxu0 0.0
    %282 = vmatpush2.msra.mxu0 0.0
    %283 = vmatprep.subr.mxu0 0.0
    %284 = vmatpush2.msra.mxu0 0.0
    %285 = vmatprep.subr.mxu0 0.0
    %286 = vmatpush2.msra.mxu0 0.0
    %287 = vmatprep.subr.mxu0 0.0
    %288 = vmatpush2.msra.mxu0 0.0
    %289 = vmatprep.subr.mxu0 0.0
    %290 = vmatpush2.msra.mxu0 0.0
    %291 = vmatprep.subr.mxu0 0.0
    %292 = vmatpush2.msra.mxu0 0.0
    %293 = vmatprep.subr.mxu0 0.0
    %294 = vmatpush2.msra.mxu0 0.0
    %295 = vmatprep.subr.mxu0 0.0
    %296 = vmatpush2.msra.mxu0 0.0
    %297 = vmatprep.subr.mxu0 0.0
    %298 = vmatpush2.msra.mxu0 0.0
    %299 = vmatprep.subr.mxu0 0.0
    %300 = vmatpush2.msra.mxu0 0.0
    %301 = vmatprep.subr.mxu0 0.0
    %302 = vmatpush2.msra.mxu0 0.0
    %303 = vmatprep.subr.mxu0 0.0
    %304 = vmatpush2.msra.mxu0 0.0
    %305 = vmatprep.subr.mxu0 0.0
    %306 = vmatpush2.msra.mxu0 0.0
    %307 = vmatprep.subr.mxu0 0.0
    %308 = vmatpush2.msra.mxu0 0.0
    %309 = vmatprep.mubr.f32.mxu0 0.0
    %310 = vmatmul.mubr.f32.gmra.mxu0 %v199
    %v311 = vpop.f32.mrf.mxu0
    %v312 = vadd.f32 %v238, %v311
    %v313 = vpop.f32.mrf.mxu0
    %v314 = vadd.f32 %v242, %v313
    %315 = vmatprep.mubr.f32.mxu0 0.0
    %316 = vmatmul.mubr.f32.gmra.mxu0 %v200
    %v317 = vpop.f32.mrf.mxu0
    %v318 = vadd.f32 %v238, %v317
    %v319 = vpop.f32.mrf.mxu0
    %v320 = vadd.f32 %v242, %v319
    %321 = vdwg.mxu0
    %v322 = vmul.f32 %v312, %v102
    %v323 = vmul.f32 %v318, %v103
    %v324 = vadd.f32 %v322, %v314
    %v325 = vadd.f32 %v323, %v320
    %326 = vst [vmem:[#allocation10] sm:$0xff] %v324
    %327 = vst [vmem:[#allocation10 + $0x8] sm:$0xff] %v325
    // Predicated region
    $region42: #{tpu_custom_call.1} parent=1 // pred_check
      _
    $region43: #{tpu_custom_call.1} parent=1 // pred_check_branch
      %329 = sbr.rel (0) target = $region45
    $region44: #{tpu_custom_call.1} parent=1 // pred_region
      %s331 = ssub.s32 256, 256
      %332 = vsyncadd [#allocation4], %s331
      %s333 = sshll.u32 [#allocation10], 4
      %s334 = int_to_ptr.vmem [resolvable:$true] %s333
      %339 = dma.vmem_to_hbm [thread:$0]  %s334, 256, %s6, [#allocation4], 128, 128, 8
    $region45: #{tpu_custom_call.1} parent=1 // pred_fallthru
      _
    // Predicated region
    $region46: #{tpu_custom_call.1} parent=1 // pred_check
      _
    $region47: #{tpu_custom_call.1} parent=1 // pred_check_branch
      %341 = sbr.rel (0) target = $region49
    $region48: #{tpu_custom_call.1} parent=1 // pred_region
      %342 = dma.done [#allocation4], 256
    $region49: #{tpu_custom_call.1} parent=1 // pred_fallthru
      _
    %343 = vsyncpa [#allocation3], 1
    %344 = vsyncpa [#allocation6], 1
    %345 = vsyncpa [#allocation9], 1
    %346 = vsyncpa [#allocation4], 1

</llo_original>
